<compile_context>
chip_gen: v7x
topology: tpu7x:2x2x1
jax: 0.10.0
libtpu: 0.0.40
codegen_flags: <defaults>
</compile_context>

<pallas_src>
import functools

import jax
import jax.numpy as jnp
from jax.experimental import pallas as pl
from jax.experimental.pallas import tpu as pltpu


def _round_up(x, m):
    return ((x + m - 1) // m) * m


def _make_kernel(num_hidden, compute_dtype):
    """Kernel for the whole net on one batch tile.

    Ref order: (alphas_smem, x_vmem, w_stack_vmem, out_vmem).
    w_stack layer i: [:in, :out] = W_i, [ONE, :out] = b_i, [ONE, ONE] = 1
    (ones lane carried forward); final layer: [:in, 0] = wf, [ONE, 0] = bf.
    """

    def kernel(alpha_ref, x_ref, w_ref, o_ref):
        h = x_ref[...]                                        # (TB, DP) f32
        for i in range(num_hidden):
            # MXU matmul: (optionally bf16) inputs, f32 accumulation.
            y = jnp.dot(h.astype(compute_dtype), w_ref[i],
                        preferred_element_type=jnp.float32)
            a = alpha_ref[i]                                  # scalar from SMEM
            h = jnp.where(y > 0, y, a * y)                    # PReLU, f32 epilogue
        y = jnp.dot(h.astype(compute_dtype), w_ref[num_hidden],
                    preferred_element_type=jnp.float32)
        o_ref[...] = y.astype(o_ref.dtype)                    # lane-dense store

    return kernel


def pack_params(params, compute_dtype=jnp.float32):
    """Fold biases into weights and stack everything into one padded array."""
    layers = params["layers"]                 # list of (w [in,out], b [1,out])
    wf, bf = params["final"]                  # wf [hidden,1], bf [1,1]

    dims = [w.shape[0] for w, _ in layers] + [w.shape[1] for w, _ in layers]
    dims += [wf.shape[0], 1]
    DP = _round_up(max(dims) + 1, 128)        # +1 reserves the ones lane
    ONE = DP - 1
    L = len(layers) + 1

    w_stack = jnp.zeros((L, DP, DP), jnp.float32)
    for i, (w, b) in enumerate(layers):
        fi, fo = w.shape
        w_stack = w_stack.at[i, :fi, :fo].set(w)
        w_stack = w_stack.at[i, ONE, :fo].set(b.reshape(-1))   # bias row
        w_stack = w_stack.at[i, ONE, ONE].set(1.0)             # keep ones lane = 1
    fi = wf.shape[0]
    w_stack = w_stack.at[L - 1, :fi, 0].set(wf[:, 0])
    w_stack = w_stack.at[L - 1, ONE, 0].set(bf[0, 0])

    return {
        "w_stack": w_stack.astype(compute_dtype),
        "alphas": params["alphas"].astype(jnp.float32),
    }


@jax.jit
def simple_fc_net_forward(x, packed):
    w_stack = packed["w_stack"]
    alphas = packed["alphas"]
    L, DP, _ = w_stack.shape
    num_hidden = L - 1
    B, Din = x.shape
    ONE = DP - 1

    # Batch padding / tiling: sublane-multiple tiles, one grid step per tile,
    # "parallel" so v7x can shard batch tiles across its two TensorCores.
    if B <= 128:
        B_pad = max(8, _round_up(B, 8))
        TB = B_pad
    else:
        B_pad = _round_up(B, 128)
        TB = 128
    grid = (B_pad // TB,)

    x_pad = jnp.zeros((B_pad, DP), jnp.float32)
    x_pad = x_pad.at[:B, :Din].set(x.astype(jnp.float32))
    x_pad = x_pad.at[:, ONE].set(1.0)          # ones lane -> folded biases

    flops = 2 * B_pad * DP * DP * L
    bytes_accessed = (2 * B_pad * DP + alphas.size) * 4 \
        + w_stack.size * w_stack.dtype.itemsize
    cost = pl.CostEstimate(flops=flops, transcendentals=0,
                           bytes_accessed=bytes_accessed)

    out = pl.pallas_call(
        _make_kernel(num_hidden, w_stack.dtype),
        out_shape=jax.ShapeDtypeStruct((B_pad, DP), jnp.float32),
        grid=grid,
        in_specs=[
            pl.BlockSpec(memory_space=pltpu.MemorySpace.SMEM),    # alphas
            pl.BlockSpec((TB, DP), lambda i: (i, 0)),             # x batch tile
            pl.BlockSpec((L, DP, DP), lambda i: (0, 0, 0)),       # all W (+b) in one DMA
        ],
        out_specs=pl.BlockSpec((TB, DP), lambda i: (i, 0)),
        compiler_params=pltpu.CompilerParams(
            dimension_semantics=("parallel",)),
        cost_estimate=cost,
    )(alphas, x_pad, w_stack)

    return out[:B, :1]


def init_params(key, input_size, hidden_size):
    """Deterministic init matching the PyTorch module's shapes.

    Layers: Linear(in, out) + PReLU(num_parameters=1, init=0.25) per pair in
    [input_size] + hidden_size, then Linear(hidden_size[-1], 1).
    Weights stored pre-transposed as [in, out].
    """
    dims = [input_size] + list(hidden_size)
    layers = []
    for i in range(len(dims) - 1):
        fan_in, fan_out = dims[i], dims[i + 1]
        key, kw, kb = jax.random.split(key, 3)
        bound = 1.0 / jnp.sqrt(fan_in)
        w = jax.random.uniform(kw, (fan_in, fan_out), jnp.float32, -bound, bound)
        b = jax.random.uniform(kb, (1, fan_out), jnp.float32, -bound, bound)
        layers.append((w, b))
    alphas = jnp.full((len(dims) - 1,), 0.25, jnp.float32)   # PReLU default

    fan_in = dims[-1]
    key, kw, kb = jax.random.split(key, 3)
    bound = 1.0 / jnp.sqrt(fan_in)
    wf = jax.random.uniform(kw, (fan_in, 1), jnp.float32, -bound, bound)
    bf = jax.random.uniform(kb, (1, 1), jnp.float32, -bound, bound)

    return {"layers": layers, "alphas": alphas, "final": (wf, bf)}


def _reference_forward(x, params, compute_dtype=jnp.float32):
    """Pure-JAX reference mirroring the kernel's dtype choices."""
    h = x.astype(jnp.float32)
    for i, (w, b) in enumerate(params["layers"]):
        y = jnp.dot(h.astype(compute_dtype), w.astype(compute_dtype),
                    preferred_element_type=jnp.float32)
        y = y + b.astype(compute_dtype).astype(jnp.float32)
        a = params["alphas"][i]
        h = jnp.where(y > 0, y, a * y)
    wf, bf = params["final"]
    y = jnp.dot(h.astype(compute_dtype), wf.astype(compute_dtype),
                preferred_element_type=jnp.float32)
    return y + bf.astype(compute_dtype).astype(jnp.float32)


if __name__ == "__main__":
    key = jax.random.PRNGKey(0)
    key, kx, kp = jax.random.split(key, 3)

    batch = 8
    input_size = 16
    hidden_size = [32, 32]

    x = jax.random.normal(kx, (batch, input_size), jnp.float32)
    params = init_params(kp, input_size, hidden_size)

    # f32 matmul inputs (exact path).
    packed_f32 = pack_params(params, jnp.float32)
    out = jax.block_until_ready(simple_fc_net_forward(x, packed_f32))
    ref = _reference_forward(x, params, jnp.float32)
    assert out.shape == (batch, 1)
    assert jnp.allclose(out, ref, atol=1e-4, rtol=1e-4), float(
        jnp.max(jnp.abs(out - ref)))

    # bf16 matmul inputs, f32 accumulation (v6e/v7x MXU lever); f32 epilogue.
    packed_bf16 = pack_params(params, jnp.bfloat16)
    out_bf = jax.block_until_ready(simple_fc_net_forward(x, packed_bf16))
    ref_bf = _reference_forward(x, params, jnp.bfloat16)
    assert jnp.allclose(out_bf, ref_bf, atol=1e-2, rtol=1e-2), float(
        jnp.max(jnp.abs(out_bf - ref_bf)))

    print("KERNEL_OK")
</pallas_src>

<mosaic_0001>
module attributes {stable_mosaic.version = 11 : i64} {
  func.func @kernel(%arg0: i32, %arg1: memref<2xf32, #tpu.memory_space<smem>>, %arg2: memref<8x128xf32, #tpu.memory_space<vmem>>, %arg3: memref<3x128x128xf32, #tpu.memory_space<vmem>>, %arg4: memref<8x128xf32, #tpu.memory_space<vmem>>) attributes {dimension_semantics = [#tpu.dimension_semantics<parallel>], iteration_bounds = array<i64: 1>, scalar_prefetch = 0 : i64, scratch_operands = 0 : i64, tpu.core_type = #tpu.core_type<tc>, window_params = [{transform_indices = @transform_0, window_bounds = array<i64: 2>}, {transform_indices = @transform_1, window_bounds = array<i64: 8, 128>}, {pipeline_mode = #tpu.pipeline_mode<synchronous>, transform_indices = @transform_2, window_bounds = array<i64: 3, 128, 128>}, {transform_indices = @transform_3, window_bounds = array<i64: 8, 128>}]} {
    %c0 = arith.constant 0 : index
    %c0_0 = arith.constant 0 : index
    %0 = vector.load %arg2[%c0, %c0_0] : memref<8x128xf32, #tpu.memory_space<vmem>>, vector<8x128xf32>
    %c0_1 = arith.constant 0 : index
    %c0_2 = arith.constant 0 : index
    %c0_3 = arith.constant 0 : index
    %1 = vector.load %arg3[%c0_1, %c0_2, %c0_3] : memref<3x128x128xf32, #tpu.memory_space<vmem>>, vector<1x128x128xf32>
    %2 = vector.shape_cast %1 : vector<1x128x128xf32> to vector<128x128xf32>
    %cst = arith.constant dense<0.000000e+00> : vector<8x128xf32>
    %3 = tpu.matmul %0, %2, %cst {dimension_numbers = #tpu.dot_dimension_numbers<[1], [0], [0], [1], [0, 0, 1, 1], [], []>} : vector<8x128xf32>, vector<128x128xf32>, vector<8x128xf32> -> vector<8x128xf32>
    %c0_4 = arith.constant 0 : index
    %4 = memref.load %arg1[%c0_4] : memref<2xf32, #tpu.memory_space<smem>>
    %cst_5 = arith.constant 0.000000e+00 : f32
    %5 = vector.broadcast %cst_5 : f32 to vector<8x128xf32>
    %6 = arith.cmpf ogt, %3, %5 : vector<8x128xf32>
    %7 = vector.broadcast %4 : f32 to vector<8x128xf32>
    %8 = arith.mulf %7, %3 : vector<8x128xf32>
    %9 = arith.select %6, %3, %8 : vector<8x128xi1>, vector<8x128xf32>
    %c1 = arith.constant 1 : index
    %c0_6 = arith.constant 0 : index
    %c0_7 = arith.constant 0 : index
    %10 = vector.load %arg3[%c1, %c0_6, %c0_7] : memref<3x128x128xf32, #tpu.memory_space<vmem>>, vector<1x128x128xf32>
    %11 = vector.shape_cast %10 : vector<1x128x128xf32> to vector<128x128xf32>
    %cst_8 = arith.constant dense<0.000000e+00> : vector<8x128xf32>
    %12 = tpu.matmul %9, %11, %cst_8 {dimension_numbers = #tpu.dot_dimension_numbers<[1], [0], [0], [1], [0, 0, 1, 1], [], []>} : vector<8x128xf32>, vector<128x128xf32>, vector<8x128xf32> -> vector<8x128xf32>
    %c1_9 = arith.constant 1 : index
    %13 = memref.load %arg1[%c1_9] : memref<2xf32, #tpu.memory_space<smem>>
    %cst_10 = arith.constant 0.000000e+00 : f32
    %14 = vector.broadcast %cst_10 : f32 to vector<8x128xf32>
    %15 = arith.cmpf ogt, %12, %14 : vector<8x128xf32>
    %16 = vector.broadcast %13 : f32 to vector<8x128xf32>
    %17 = arith.mulf %16, %12 : vector<8x128xf32>
    %18 = arith.select %15, %12, %17 : vector<8x128xi1>, vector<8x128xf32>
    %c2 = arith.constant 2 : index
    %c0_11 = arith.constant 0 : index
    %c0_12 = arith.constant 0 : index
    %19 = vector.load %arg3[%c2, %c0_11, %c0_12] : memref<3x128x128xf32, #tpu.memory_space<vmem>>, vector<1x128x128xf32>
    %20 = vector.shape_cast %19 : vector<1x128x128xf32> to vector<128x128xf32>
    %cst_13 = arith.constant dense<0.000000e+00> : vector<8x128xf32>
    %21 = tpu.matmul %18, %20, %cst_13 {dimension_numbers = #tpu.dot_dimension_numbers<[1], [0], [0], [1], [0, 0, 1, 1], [], []>} : vector<8x128xf32>, vector<128x128xf32>, vector<8x128xf32> -> vector<8x128xf32>
    %c0_14 = arith.constant 0 : index
    %c0_15 = arith.constant 0 : index
    %22 = vector.load %arg4[%c0_14, %c0_15] : memref<8x128xf32, #tpu.memory_space<vmem>>, vector<8x128xf32>
    tpu.vector_store %arg4[%c0_14, %c0_15], %21 {strides = array<i32>} : memref<8x128xf32, #tpu.memory_space<vmem>>, vector<8x128xf32>,
    return
  }
  func.func @transform_0(%arg0: i32) -> i32 {
    %c0_i32 = arith.constant 0 : i32
    %c0_i32_0 = arith.constant 0 : i32
    return %c0_i32 : i32
  }
  func.func @transform_1(%arg0: i32) -> (i32, i32) {
    %c0_i32 = arith.constant 0 : i32
    %c0_i32_0 = arith.constant 0 : i32
    return %arg0, %c0_i32 : i32, i32
  }
  func.func @transform_2(%arg0: i32) -> (i32, i32, i32) {
    %c0_i32 = arith.constant 0 : i32
    %c0_i32_0 = arith.constant 0 : i32
    %c0_i32_1 = arith.constant 0 : i32
    %c0_i32_2 = arith.constant 0 : i32
    return %c0_i32, %c0_i32_0, %c0_i32_1 : i32, i32, i32
  }
  func.func @transform_3(%arg0: i32) -> (i32, i32) {
    %c0_i32 = arith.constant 0 : i32
    %c0_i32_0 = arith.constant 0 : i32
    return %arg0, %c0_i32 : i32, i32
  }
}

</mosaic_0001>

<llo_original>
// kernel: simple_fc_net_forward.1
$region0: #{simple_fc_net_forward.1}
  #allocation0 [shape = 'u32[]', space=smem, size = 0x4, offset = 0x4, fixed_abs, tag = 'smem constant byte address 0x4 - core index']
  #allocation1 [shape = 'u32[144,128]{1,0:T(1,128)}', space=vmem, size = 0x12000, scoped, tag = 'internal scratch']
  %s0 = inlined_call_operand.vmem [shape: f32[2], index: 0, kind: input, shape index: {}]
  %s1 = inlined_call_operand.vmem [shape: f32[8,128], index: 1, kind: input, shape index: {}]
  %s2 = inlined_call_operand.hbm [shape: f32[3,128,128], index: 2, kind: input, shape index: {}]
  %s3 = inlined_call_operand.vmem [shape: f32[8,128], index: 3, kind: output, shape index: {}]
  %s4 = sld [smem:[#allocation0]]
  $region30: #{simple_fc_net_forward.1} parent=0
    _
  %s6 = ssub.s32 1, %s4
  %s7 = scalar_select 0, %s6, %s4
  $region1: #{simple_fc_net_forward.1} parent=0
    #allocation2 [shape = 'u8[512]{0}', space=smem, size = 0x200, scoped, tag = 'input window, operand 0, single buffered']
    #allocation3 [shape = 's32[1]{0}', space=sflag, size = 0x4, scoped, tag = 'scoped memory for simple_fc_net_forward.1']
    #allocation4 [shape = 's32[1]{0}', space=sflag, size = 0x4, scoped, tag = 'scoped memory for simple_fc_net_forward.1']
    #allocation5 [shape = 'u8[196608]{0}', space=vmem, size = 0x30000, scoped, tag = 'input window, operand 2, single buffered']
    %8 = vsyncpa [#allocation4], 0
    %9 = vsyncpa [#allocation3], 0
    // Predicated region
    $region2: #{simple_fc_net_forward.1} parent=1 // pred_check
      _
    $region3: #{simple_fc_net_forward.1} parent=1 // pred_check_branch
      %11 = sbr.rel (0) target = $region5
    $region4: #{simple_fc_net_forward.1} parent=1 // pred_region
      %s13 = ssub.s32 16, 16
      %14 = vsyncadd [#allocation4], %s13
      %s16 = sshll.u32 %s0, 4
      %s17 = int_to_ptr.vmem [resolvable:$true] %s16
      %19 = dma.vmem_to_smem %s17, 16, [#allocation2], [#allocation4]
    $region5: #{simple_fc_net_forward.1} parent=1 // pred_fallthru
      _
    // Predicated region
    $region6: #{simple_fc_net_forward.1} parent=1 // pred_check
      _
    $region7: #{simple_fc_net_forward.1} parent=1 // pred_check_branch
      %21 = sbr.rel (0) target = $region9
    $region8: #{simple_fc_net_forward.1} parent=1 // pred_region
      _
    $region9: #{simple_fc_net_forward.1} parent=1 // pred_fallthru
      _
    // Predicated region
    $region10: #{simple_fc_net_forward.1} parent=1 // pred_check
      _
    $region11: #{simple_fc_net_forward.1} parent=1 // pred_check_branch
      %23 = sbr.rel (0) target = $region13
    $region12: #{simple_fc_net_forward.1} parent=1 // pred_region
      %s25 = ssub.s32 6144, 6144
      %26 = vsyncadd [#allocation3], %s25
      %s27 = sshll.u32 [#allocation5], 4
      %s28 = int_to_ptr.vmem [resolvable:$true] %s27
      %33 = dma.hbm_to_vmem [thread:$0]  %s2, 6144, %s28, [#allocation3], 128, 128, 8
    $region13: #{simple_fc_net_forward.1} parent=1 // pred_fallthru
      _
    // Predicated region
    $region14: #{simple_fc_net_forward.1} parent=1 // pred_check
      _
    $region15: #{simple_fc_net_forward.1} parent=1 // pred_check_branch
      %35 = sbr.rel (0) target = $region17
    $region16: #{simple_fc_net_forward.1} parent=1 // pred_region
      %36 = dma.done [#allocation4], 16
    $region17: #{simple_fc_net_forward.1} parent=1 // pred_fallthru
      _
    // Predicated region
    $region18: #{simple_fc_net_forward.1} parent=1 // pred_check
      _
    $region19: #{simple_fc_net_forward.1} parent=1 // pred_check_branch
      %38 = sbr.rel (0) target = $region21
    $region20: #{simple_fc_net_forward.1} parent=1 // pred_region
      %39 = dma.done [#allocation3], 6144
    $region21: #{simple_fc_net_forward.1} parent=1 // pred_fallthru
      _
    %40 = sfence
    %v41 = vld [vmem:[%s1] sm:$0xff]
    %v42 = vld [vmem:[#allocation5] sm:$0xff]
    %v43 = vld [vmem:[#allocation5 + $0x8] sm:$0xff]
    %v44 = vld [vmem:[#allocation5 + $0x10] sm:$0xff]
    %v45 = vld [vmem:[#allocation5 + $0x18] sm:$0xff]
    %v46 = vld [vmem:[#allocation5 + $0x20] sm:$0xff]
    %v47 = vld [vmem:[#allocation5 + $0x28] sm:$0xff]
    %v48 = vld [vmem:[#allocation5 + $0x30] sm:$0xff]
    %v49 = vld [vmem:[#allocation5 + $0x38] sm:$0xff]
    %v50 = vld [vmem:[#allocation5 + $0x40] sm:$0xff]
    %v51 = vld [vmem:[#allocation5 + $0x48] sm:$0xff]
    %v52 = vld [vmem:[#allocation5 + $0x50] sm:$0xff]
    %v53 = vld [vmem:[#allocation5 + $0x58] sm:$0xff]
    %v54 = vld [vmem:[#allocation5 + $0x60] sm:$0xff]
    %v55 = vld [vmem:[#allocation5 + $0x68] sm:$0xff]
    %v56 = vld [vmem:[#allocation5 + $0x70] sm:$0xff]
    %v57 = vld [vmem:[#allocation5 + $0x78] sm:$0xff]
    %58 = vmatprep.subr.mxu0 0.0
    %59 = vmatpush1.msra.mxu0 %v42
    %60 = vmatprep.subr.mxu0 0.0
    %61 = vmatpush1.msra.mxu0 %v43
    %62 = vmatprep.subr.mxu0 0.0
    %63 = vmatpush1.msra.mxu0 %v44
    %64 = vmatprep.subr.mxu0 0.0
    %65 = vmatpush1.msra.mxu0 %v45
    %66 = vmatprep.subr.mxu0 0.0
    %67 = vmatpush1.msra.mxu0 %v46
    %68 = vmatprep.subr.mxu0 0.0
    %69 = vmatpush1.msra.mxu0 %v47
    %70 = vmatprep.subr.mxu0 0.0
    %71 = vmatpush1.msra.mxu0 %v48
    %72 = vmatprep.subr.mxu0 0.0
    %73 = vmatpush1.msra.mxu0 %v49
    %74 = vmatprep.subr.mxu0 0.0
    %75 = vmatpush1.msra.mxu0 %v50
    %76 = vmatprep.subr.mxu0 0.0
    %77 = vmatpush1.msra.mxu0 %v51
    %78 = vmatprep.subr.mxu0 0.0
    %79 = vmatpush1.msra.mxu0 %v52
    %80 = vmatprep.subr.mxu0 0.0
    %81 = vmatpush1.msra.mxu0 %v53
    %82 = vmatprep.subr.mxu0 0.0
    %83 = vmatpush1.msra.mxu0 %v54
    %84 = vmatprep.subr.mxu0 0.0
    %85 = vmatpush1.msra.mxu0 %v55
    %86 = vmatprep.subr.mxu0 0.0
    %87 = vmatpush1.msra.mxu0 %v56
    %88 = vmatprep.subr.mxu0 0.0
    %89 = vmatpush1.msra.mxu0 %v57
    %90 = vmatprep.subr.mxu0 0.0
    %91 = vmatpush1.msra.mxu0 0.0
    %92 = vmatprep.subr.mxu0 0.0
    %93 = vmatpush1.msra.mxu0 0.0
    %94 = vmatprep.subr.mxu0 0.0
    %95 = vmatpush1.msra.mxu0 0.0
    %96 = vmatprep.subr.mxu0 0.0
    %97 = vmatpush1.msra.mxu0 0.0
    %98 = vmatprep.subr.mxu0 0.0
    %99 = vmatpush1.msra.mxu0 0.0
    %100 = vmatprep.subr.mxu0 0.0
    %101 = vmatpush1.msra.mxu0 0.0
    %102 = vmatprep.subr.mxu0 0.0
    %103 = vmatpush1.msra.mxu0 0.0
    %104 = vmatprep.subr.mxu0 0.0
    %105 = vmatpush1.msra.mxu0 0.0
    %106 = vmatprep.subr.mxu0 0.0
    %107 = vmatpush1.msra.mxu0 0.0
    %108 = vmatprep.subr.mxu0 0.0
    %109 = vmatpush1.msra.mxu0 0.0
    %110 = vmatprep.subr.mxu0 0.0
    %111 = vmatpush1.msra.mxu0 0.0
    %112 = vmatprep.subr.mxu0 0.0
    %113 = vmatpush1.msra.mxu0 0.0
    %114 = vmatprep.subr.mxu0 0.0
    %115 = vmatpush1.msra.mxu0 0.0
    %116 = vmatprep.subr.mxu0 0.0
    %117 = vmatpush1.msra.mxu0 0.0
    %118 = vmatprep.subr.mxu0 0.0
    %119 = vmatpush1.msra.mxu0 0.0
    %120 = vmatprep.subr.mxu0 0.0
    %121 = vmatpush1.msra.mxu0 0.0
    %122 = vmatprep.mubr.f32.mxu0 0.0
    %123 = vmatmul.mubr.f32.gmra.mrb[0].mxu0 %v41
    %v124 = vpop.f32.mrb[0].mxu0
    %v125 = vadd.f32 0.0, %v124
    %v126 = vpop.f32.mrb[0].mxu0
    %127 = vdwg.mxu0
    %s128 = sld [smem:[#allocation2]]
    %vm129 = vcmp.gt.f32.partialorder %v125, 0.0
    %v130 = vstv %s128
    %v131 = vmul.f32 %v130, %v125
    %v132 = vsel %vm129, %v125, %v131
    %s133 = scalar_lea.vmem [#allocation5], 128
    %v134 = vld [vmem:[%s133] sm:$0xff]
    %v135 = vld [vmem:[%s133 + $0x8] sm:$0xff]
    %v136 = vld [vmem:[%s133 + $0x10] sm:$0xff]
    %v137 = vld [vmem:[%s133 + $0x18] sm:$0xff]
    %v138 = vld [vmem:[%s133 + $0x20] sm:$0xff]
    %v139 = vld [vmem:[%s133 + $0x28] sm:$0xff]
    %v140 = vld [vmem:[%s133 + $0x30] sm:$0xff]
    %v141 = vld [vmem:[%s133 + $0x38] sm:$0xff]
    %v142 = vld [vmem:[%s133 + $0x40] sm:$0xff]
    %v143 = vld [vmem:[%s133 + $0x48] sm:$0xff]
    %v144 = vld [vmem:[%s133 + $0x50] sm:$0xff]
    %v145 = vld [vmem:[%s133 + $0x58] sm:$0xff]
    %v146 = vld [vmem:[%s133 + $0x60] sm:$0xff]
    %v147 = vld [vmem:[%s133 + $0x68] sm:$0xff]
    %v148 = vld [vmem:[%s133 + $0x70] sm:$0xff]
    %v149 = vld [vmem:[%s133 + $0x78] sm:$0xff]
    %150 = vmatprep.subr.mxu0 0.0
    %151 = vmatpush1.msra.mxu0 %v134
    %152 = vmatprep.subr.mxu0 0.0
    %153 = vmatpush1.msra.mxu0 %v135
    %154 = vmatprep.subr.mxu0 0.0
    %155 = vmatpush1.msra.mxu0 %v136
    %156 = vmatprep.subr.mxu0 0.0
    %157 = vmatpush1.msra.mxu0 %v137
    %158 = vmatprep.subr.mxu0 0.0
    %159 = vmatpush1.msra.mxu0 %v138
    %160 = vmatprep.subr.mxu0 0.0
    %161 = vmatpush1.msra.mxu0 %v139
    %162 = vmatprep.subr.mxu0 0.0
    %163 = vmatpush1.msra.mxu0 %v140
    %164 = vmatprep.subr.mxu0 0.0
    %165 = vmatpush1.msra.mxu0 %v141
    %166 = vmatprep.subr.mxu0 0.0
    %167 = vmatpush1.msra.mxu0 %v142
    %168 = vmatprep.subr.mxu0 0.0
    %169 = vmatpush1.msra.mxu0 %v143
    %170 = vmatprep.subr.mxu0 0.0
    %171 = vmatpush1.msra.mxu0 %v144
    %172 = vmatprep.subr.mxu0 0.0
    %173 = vmatpush1.msra.mxu0 %v145
    %174 = vmatprep.subr.mxu0 0.0
    %175 = vmatpush1.msra.mxu0 %v146
    %176 = vmatprep.subr.mxu0 0.0
    %177 = vmatpush1.msra.mxu0 %v147
    %178 = vmatprep.subr.mxu0 0.0
    %179 = vmatpush1.msra.mxu0 %v148
    %180 = vmatprep.subr.mxu0 0.0
    %181 = vmatpush1.msra.mxu0 %v149
    %182 = vmatprep.subr.mxu0 0.0
    %183 = vmatpush1.msra.mxu0 0.0
    %184 = vmatprep.subr.mxu0 0.0
    %185 = vmatpush1.msra.mxu0 0.0
    %186 = vmatprep.subr.mxu0 0.0
    %187 = vmatpush1.msra.mxu0 0.0
    %188 = vmatprep.subr.mxu0 0.0
    %189 = vmatpush1.msra.mxu0 0.0
    %190 = vmatprep.subr.mxu0 0.0
    %191 = vmatpush1.msra.mxu0 0.0
    %192 = vmatprep.subr.mxu0 0.0
    %193 = vmatpush1.msra.mxu0 0.0
    %194 = vmatprep.subr.mxu0 0.0
    %195 = vmatpush1.msra.mxu0 0.0
    %196 = vmatprep.subr.mxu0 0.0
    %197 = vmatpush1.msra.mxu0 0.0
    %198 = vmatprep.subr.mxu0 0.0
    %199 = vmatpush1.msra.mxu0 0.0
    %200 = vmatprep.subr.mxu0 0.0
    %201 = vmatpush1.msra.mxu0 0.0
    %202 = vmatprep.subr.mxu0 0.0
    %203 = vmatpush1.msra.mxu0 0.0
    %204 = vmatprep.subr.mxu0 0.0
    %205 = vmatpush1.msra.mxu0 0.0
    %206 = vmatprep.subr.mxu0 0.0
    %207 = vmatpush1.msra.mxu0 0.0
    %208 = vmatprep.subr.mxu0 0.0
    %209 = vmatpush1.msra.mxu0 0.0
    %210 = vmatprep.subr.mxu0 0.0
    %211 = vmatpush1.msra.mxu0 0.0
    %212 = vmatprep.subr.mxu0 0.0
    %213 = vmatpush1.msra.mxu0 0.0
    %214 = vmatprep.mubr.f32.mxu0 0.0
    %215 = vmatmul.mubr.f32.gmra.mrb[0].mxu0 %v132
    %v216 = vpop.f32.mrb[0].mxu0
    %v217 = vadd.f32 0.0, %v216
    %v218 = vpop.f32.mrb[0].mxu0
    %219 = vdwg.mxu0
    %s220 = sld [smem:[#allocation2 + $0x1]]
    %vm221 = vcmp.gt.f32.partialorder %v217, 0.0
    %v222 = vstv %s220
    %v223 = vmul.f32 %v222, %v217
    %v224 = vsel %vm221, %v217, %v223
    %s225 = scalar_lea.vmem [#allocation5], 256
    %v226 = vld [vmem:[%s225] sm:$0xff]
    %v227 = vld [vmem:[%s225 + $0x8] sm:$0xff]
    %v228 = vld [vmem:[%s225 + $0x10] sm:$0xff]
    %v229 = vld [vmem:[%s225 + $0x18] sm:$0xff]
    %v230 = vld [vmem:[%s225 + $0x20] sm:$0xff]
    %v231 = vld [vmem:[%s225 + $0x28] sm:$0xff]
    %v232 = vld [vmem:[%s225 + $0x30] sm:$0xff]
    %v233 = vld [vmem:[%s225 + $0x38] sm:$0xff]
    %v234 = vld [vmem:[%s225 + $0x40] sm:$0xff]
    %v235 = vld [vmem:[%s225 + $0x48] sm:$0xff]
    %v236 = vld [vmem:[%s225 + $0x50] sm:$0xff]
    %v237 = vld [vmem:[%s225 + $0x58] sm:$0xff]
    %v238 = vld [vmem:[%s225 + $0x60] sm:$0xff]
    %v239 = vld [vmem:[%s225 + $0x68] sm:$0xff]
    %v240 = vld [vmem:[%s225 + $0x70] sm:$0xff]
    %v241 = vld [vmem:[%s225 + $0x78] sm:$0xff]
    %242 = vmatprep.subr.mxu0 0.0
    %243 = vmatpush1.msra.mxu0 %v226
    %244 = vmatprep.subr.mxu0 0.0
    %245 = vmatpush1.msra.mxu0 %v227
    %246 = vmatprep.subr.mxu0 0.0
    %247 = vmatpush1.msra.mxu0 %v228
    %248 = vmatprep.subr.mxu0 0.0
    %249 = vmatpush1.msra.mxu0 %v229
    %250 = vmatprep.subr.mxu0 0.0
    %251 = vmatpush1.msra.mxu0 %v230
    %252 = vmatprep.subr.mxu0 0.0
    %253 = vmatpush1.msra.mxu0 %v231
    %254 = vmatprep.subr.mxu0 0.0
    %255 = vmatpush1.msra.mxu0 %v232
    %256 = vmatprep.subr.mxu0 0.0
    %257 = vmatpush1.msra.mxu0 %v233
    %258 = vmatprep.subr.mxu0 0.0
    %259 = vmatpush1.msra.mxu0 %v234
    %260 = vmatprep.subr.mxu0 0.0
    %261 = vmatpush1.msra.mxu0 %v235
    %262 = vmatprep.subr.mxu0 0.0
    %263 = vmatpush1.msra.mxu0 %v236
    %264 = vmatprep.subr.mxu0 0.0
    %265 = vmatpush1.msra.mxu0 %v237
    %266 = vmatprep.subr.mxu0 0.0
    %267 = vmatpush1.msra.mxu0 %v238
    %268 = vmatprep.subr.mxu0 0.0
    %269 = vmatpush1.msra.mxu0 %v239
    %270 = vmatprep.subr.mxu0 0.0
    %271 = vmatpush1.msra.mxu0 %v240
    %272 = vmatprep.subr.mxu0 0.0
    %273 = vmatpush1.msra.mxu0 %v241
    %274 = vmatprep.subr.mxu0 0.0
    %275 = vmatpush1.msra.mxu0 0.0
    %276 = vmatprep.subr.mxu0 0.0
    %277 = vmatpush1.msra.mxu0 0.0
    %278 = vmatprep.subr.mxu0 0.0
    %279 = vmatpush1.msra.mxu0 0.0
    %280 = vmatprep.subr.mxu0 0.0
    %281 = vmatpush1.msra.mxu0 0.0
    %282 = vmatprep.subr.mxu0 0.0
    %283 = vmatpush1.msra.mxu0 0.0
    %284 = vmatprep.subr.mxu0 0.0
    %285 = vmatpush1.msra.mxu0 0.0
    %286 = vmatprep.subr.mxu0 0.0
    %287 = vmatpush1.msra.mxu0 0.0
    %288 = vmatprep.subr.mxu0 0.0
    %289 = vmatpush1.msra.mxu0 0.0
    %290 = vmatprep.subr.mxu0 0.0
    %291 = vmatpush1.msra.mxu0 0.0
    %292 = vmatprep.subr.mxu0 0.0
    %293 = vmatpush1.msra.mxu0 0.0
    %294 = vmatprep.subr.mxu0 0.0
    %295 = vmatpush1.msra.mxu0 0.0
    %296 = vmatprep.subr.mxu0 0.0
    %297 = vmatpush1.msra.mxu0 0.0
    %298 = vmatprep.subr.mxu0 0.0
    %299 = vmatpush1.msra.mxu0 0.0
    %300 = vmatprep.subr.mxu0 0.0
    %301 = vmatpush1.msra.mxu0 0.0
    %302 = vmatprep.subr.mxu0 0.0
    %303 = vmatpush1.msra.mxu0 0.0
    %304 = vmatprep.subr.mxu0 0.0
    %305 = vmatpush1.msra.mxu0 0.0
    %306 = vmatprep.mubr.f32.mxu0 0.0
    %307 = vmatmul.mubr.f32.gmra.mrb[0].mxu0 %v224
    %v308 = vpop.f32.mrb[0].mxu0
    %v309 = vadd.f32 0.0, %v308
    %v310 = vpop.f32.mrb[0].mxu0
    %311 = vdwg.mxu0
    %312 = vst [vmem:[%s3] sm:$0xff] %v309
    // Predicated region
    $region22: #{simple_fc_net_forward.1} parent=1 // pred_check
      _
    $region23: #{simple_fc_net_forward.1} parent=1 // pred_check_branch
      %314 = sbr.rel (0) target = $region25
    $region24: #{simple_fc_net_forward.1} parent=1 // pred_region
      _
    $region25: #{simple_fc_net_forward.1} parent=1 // pred_fallthru
      _
    // Predicated region
    $region26: #{simple_fc_net_forward.1} parent=1 // pred_check
      _
    $region27: #{simple_fc_net_forward.1} parent=1 // pred_check_branch
      %316 = sbr.rel (0) target = $region29
    $region28: #{simple_fc_net_forward.1} parent=1 // pred_region
      _
    $region29: #{simple_fc_net_forward.1} parent=1 // pred_fallthru
      _
    %317 = vsyncpa [#allocation3], 1
    %318 = vsyncpa [#allocation4], 1

</llo_original>
